<compile_context>
chip_gen: v6e
topology: v6e:2x2x1
jax: 0.10.0
libtpu: 0.0.40
codegen_flags: <defaults>
</compile_context>

<pallas_src>
import functools

import jax
import jax.numpy as jnp
import numpy as np
from jax.experimental import pallas as pl
from jax.experimental.pallas import tpu as pltpu

EPS_PROTO = 1e-4          # self.epsilon in the PyTorch module
EPS_L2 = 1e-12            # F.normalize default eps
HEAD_WIDTH = 128          # lane-dense packed head-output width
VMEM_BUDGET = 40 * 1024 * 1024   # per-call scoped VMEM: safe on v7x (64 MiB/TC)


def _vmem():
    return pl.BlockSpec(memory_space=pltpu.MemorySpace.VMEM)


# ---------------------------------------------------------------------------
# Shared kernel bodies
# ---------------------------------------------------------------------------
def _l2norm_relu(h, emb_normalize=True):
    if emb_normalize:
        ssq = jnp.sum(h * h, axis=-1, keepdims=True)
        h = h * jax.lax.rsqrt(jnp.maximum(ssq, EPS_L2 * EPS_L2))   # EUP rsqrt
    return jnp.maximum(h, 0.0)                                      # gnn_non_linear = ReLU


def _gcn_layer_body(a_bf16, x, w, b):
    """ReLU( L2norm( A_hat @ (x @ W) + b ) ).  bf16 MXU inputs, f32 accumulate."""
    xw = jnp.dot(x.astype(jnp.bfloat16), w.astype(jnp.bfloat16),
                 preferred_element_type=jnp.float32)
    h = jnp.dot(a_bf16, xw.astype(jnp.bfloat16),
                preferred_element_type=jnp.float32) + b
    return _l2norm_relu(h)


def _masked_graph_max(h, mask, num_graphs):
    """Per-graph max readout, returned as a value [G, D].

    Exact because h >= 0 after ReLU and masks are one-hot (masked rows
    contribute 0); empty graphs yield 0 instead of -inf."""
    rows = [jnp.max(h * mask[:, g:g + 1], axis=0, keepdims=True)
            for g in range(num_graphs)]
    return jnp.concatenate(rows, axis=0)
    # TODO(synk): for large graph counts (G >= 32) switch to a contiguous-segment
    # (offset/count) reduction to avoid the O(G*N*D) mask multiplies.


def _head_compute(ge, pt, wt):
    """Prototype distances, similarities, logits, exact softmax."""
    xp = jnp.dot(ge, pt, preferred_element_type=jnp.float32)         # [G, Mp]
    x2 = jnp.sum(ge * ge, axis=1, keepdims=True)                     # [G, 1]
    p2 = jnp.sum(pt * pt, axis=0, keepdims=True)                     # [1, Mp]
    dist = jnp.maximum(-2.0 * xp + x2 + p2, 0.0)     # clamp: fp cancellation can go < 0
    sim = jnp.log((dist + 1.0) / (dist + EPS_PROTO))
    logits = jnp.dot(sim, wt, preferred_element_type=jnp.float32)    # [G, C]
    mx = jnp.max(logits, axis=-1, keepdims=True)
    e = jnp.exp(logits - mx)
    probs = e / jnp.sum(e, axis=-1, keepdims=True)   # exact softmax (head is tiny)
    return logits, probs, sim, dist


def _pack_head(logits, probs, sim, dist, width):
    """Pack [logits | probs | sim | dist | zeros] into one lane-dense slab via tiny
    selector matmuls -> a single unmasked full-width store."""
    c = logits.shape[1]
    mp = dist.shape[1]

    def selector(rows, offset):
        r = jax.lax.broadcasted_iota(jnp.int32, (rows, width), 0)
        col = jax.lax.broadcasted_iota(jnp.int32, (rows, width), 1)
        return (col == r + offset).astype(jnp.float32)

    return (jnp.dot(logits, selector(c, 0), preferred_element_type=jnp.float32)
            + jnp.dot(probs, selector(c, c), preferred_element_type=jnp.float32)
            + jnp.dot(sim, selector(mp, 2 * c), preferred_element_type=jnp.float32)
            + jnp.dot(dist, selector(mp, 2 * c + mp), preferred_element_type=jnp.float32))


def _unpack_head(head, params):
    c = params["last_w"].shape[0]
    m = params["proto"].shape[0]
    mp = params["proto_t_pad"].shape[1]
    logits = head[:, 0:c]
    probs = head[:, c:2 * c]
    sim = head[:, 2 * c:2 * c + m]
    dist = head[:, 2 * c + mp:2 * c + mp + m]
    return logits, probs, sim, dist


# ---------------------------------------------------------------------------
# Path A (small/mid graphs): single fused kernel for the whole forward.
# ---------------------------------------------------------------------------
def gcnnet_fused_kernel(*refs, num_layers, num_graphs):
    a_ref, x_ref = refs[0], refs[1]
    layer_refs = refs[2:2 + 2 * num_layers]
    mask_ref, pt_ref, wt_ref = refs[2 + 2 * num_layers:5 + 2 * num_layers]
    node_ref, graph_ref, head_ref = refs[5 + 2 * num_layers:]

    a = a_ref[...]                                        # bf16 [N, N]
    h = x_ref[...]                                        # f32  [N, C_in]
    for i in range(num_layers):
        h = _gcn_layer_body(a, h, layer_refs[2 * i][...], layer_refs[2 * i + 1][...])
    node_ref[...] = h

    ge = _masked_graph_max(h, mask_ref[...], num_graphs)  # value, no ref round-trip
    graph_ref[...] = ge                                   # single full-width store
    logits, probs, sim, dist = _head_compute(ge, pt_ref[...], wt_ref[...])
    head_ref[...] = _pack_head(logits, probs, sim, dist, head_ref.shape[1])
    # TODO(synk): on v7x this un-gridded path uses one of the two TensorCores;
    # for N near the fused threshold add a "parallel" row-tiled axis or lower the
    # threshold on that generation.


def _forward_fused(params, x, a_bf16, mask_t):
    n = x.shape[0]
    g = mask_t.shape[1]
    layers = params["gnn"]
    d = layers[-1][0].shape[1]
    args = [a_bf16, x]
    for w, b in layers:
        args += [w, b.reshape(1, -1)]
    args += [mask_t, params["proto_t_pad"], params["last_w_t_pad"]]

    node_emb, graph_emb, head = pl.pallas_call(
        functools.partial(gcnnet_fused_kernel, num_layers=len(layers), num_graphs=g),
        out_shape=(jax.ShapeDtypeStruct((n, d), jnp.float32),
                   jax.ShapeDtypeStruct((g, d), jnp.float32),
                   jax.ShapeDtypeStruct((g, HEAD_WIDTH), jnp.float32)),
        in_specs=[_vmem()] * len(args),
        out_specs=(_vmem(), _vmem(), _vmem()),
        compiler_params=pltpu.CompilerParams(vmem_limit_bytes=VMEM_BUDGET),
    )(*args)
    logits, probs, _sim, min_dist = _unpack_head(head, params)
    return logits, probs, node_emb, graph_emb, min_dist


# ---------------------------------------------------------------------------
# Path B (large graphs): tiled GCN layers + row-tiled pool/head kernel.
# ---------------------------------------------------------------------------
def _pick_row_tile(n, maximum=4096):
    if n <= maximum:
        return n
    for t in (4096, 2048, 1024, 512):
        if n % t == 0:
            return t
    return n


def _linear_kernel(x_ref, w_ref, o_ref):
    o_ref[...] = jnp.dot(x_ref[...].astype(jnp.bfloat16),
                         w_ref[...].astype(jnp.bfloat16),
                         preferred_element_type=jnp.float32).astype(o_ref.dtype)


def linear_tiled(x, w):
    """XW computed once up-front; large row tiles so it is not step-overhead bound.
    Output stored bf16 to feed the MXU in the aggregation."""
    n, cin = x.shape
    cout = w.shape[1]
    tm = _pick_row_tile(n)
    assert n % tm == 0
    return pl.pallas_call(
        _linear_kernel,
        out_shape=jax.ShapeDtypeStruct((n, cout), jnp.bfloat16),
        grid_spec=pltpu.PrefetchScalarGridSpec(
            num_scalar_prefetch=0,
            grid=(n // tm,),
            in_specs=[pl.BlockSpec((tm, cin), lambda i: (i, 0)),
                      pl.BlockSpec((cin, cout), lambda i: (0, 0))],
            out_specs=pl.BlockSpec((tm, cout), lambda i: (i, 0))),
        compiler_params=pltpu.CompilerParams(
            dimension_semantics=("parallel",),
            vmem_limit_bytes=VMEM_BUDGET),
    )(x, w)


def _aggregate_kernel(a_ref, xw_ref, b_ref, o_ref, acc_ref, *, tk, emb_normalize):
    k = pl.program_id(1)

    @pl.when(k == 0)
    def _():
        acc_ref[...] = jnp.zeros_like(acc_ref)

    # XW is fully VMEM-resident; slice the k-th chunk in-kernel.
    start = pl.multiple_of(k * tk, tk)
    acc_ref[...] += jnp.dot(a_ref[...], xw_ref[pl.ds(start, tk), :],
                            preferred_element_type=jnp.float32)

    @pl.when(k == pl.num_programs(1) - 1)
    def _():
        h = acc_ref[...] + b_ref[...]
        o_ref[...] = _l2norm_relu(h, emb_normalize).astype(o_ref.dtype)


def aggregate_tiled(a_bf16, xw_bf16, b, *, tm, tk, out_dtype, emb_normalize=True):
    """out = ReLU(L2norm(A_hat @ XW + b)).

    A_hat is the only streamed O(N^2) operand (tm x tk tiles); XW, bias and the
    output row-tile are VMEM-resident.  f32 accumulator scratch; intermediate
    layers emit bf16, the final layer emits f32."""
    n = a_bf16.shape[0]
    cout = xw_bf16.shape[1]
    kernel = functools.partial(_aggregate_kernel, tk=tk, emb_normalize=emb_normalize)
    return pl.pallas_call(
        kernel,
        out_shape=jax.ShapeDtypeStruct((n, cout), out_dtype),
        grid_spec=pltpu.PrefetchScalarGridSpec(
            num_scalar_prefetch=0,
            grid=(n // tm, n // tk),
            in_specs=[
                pl.BlockSpec((tm, tk), lambda i, k: (i, k)),      # streamed A_hat
                pl.BlockSpec((n, cout), lambda i, k: (0, 0)),     # resident XW (DMA'd once)
                pl.BlockSpec((1, cout), lambda i, k: (0, 0)),     # resident bias
            ],
            out_specs=pl.BlockSpec((tm, cout), lambda i, k: (i, 0)),
            scratch_shapes=[pltpu.VMEM((tm, cout), jnp.float32)]),
        compiler_params=pltpu.CompilerParams(
            dimension_semantics=("parallel", "arbitrary"),   # row axis shards TCs on v7x
            vmem_limit_bytes=VMEM_BUDGET),
    )(a_bf16, xw_bf16, b.reshape(1, -1))
    # TODO(synk): remaining bandwidth lever is 8-bit A_hat (fp8 on v7x, int8+scale
    # on v5e/v6e); needs tolerance validation, so not enabled by default.


def _pool_head_kernel(h_ref, mask_ref, pt_ref, wt_ref, graph_ref, head_ref, gmax_ref,
                      *, num_graphs):
    i = pl.program_id(0)

    @pl.when(i == 0)
    def _():
        gmax_ref[...] = jnp.zeros_like(gmax_ref)

    h = h_ref[...].astype(jnp.float32)
    tile_ge = _masked_graph_max(h, mask_ref[...], num_graphs)        # [G, D] value
    gp = gmax_ref.shape[0]
    if gp > num_graphs:
        tile_ge = jnp.concatenate(
            [tile_ge, jnp.zeros((gp - num_graphs, tile_ge.shape[1]), jnp.float32)],
            axis=0)
    gmax_ref[...] = jnp.maximum(gmax_ref[...], tile_ge)              # full-width store

    @pl.when(i == pl.num_programs(0) - 1)
    def _():
        ge = gmax_ref[0:num_graphs, :]                               # value, no readback stall
        graph_ref[...] = ge
        logits, probs, sim, dist = _head_compute(ge, pt_ref[...], wt_ref[...])
        head_ref[...] = _pack_head(logits, probs, sim, dist, head_ref.shape[1])


def pool_head(h, mask_t, pt_pad, wt_pad, *, tp):
    """Row-tiled global_max_pool + prototype head (h is never loaded as one block)."""
    n, d = h.shape
    g = mask_t.shape[1]
    gp = max(8, ((g + 7) // 8) * 8)
    mp = pt_pad.shape[1]
    c = wt_pad.shape[1]
    assert n % tp == 0
    return pl.pallas_call(
        functools.partial(_pool_head_kernel, num_graphs=g),
        out_shape=(jax.ShapeDtypeStruct((g, d), jnp.float32),
                   jax.ShapeDtypeStruct((g, HEAD_WIDTH), jnp.float32)),
        grid_spec=pltpu.PrefetchScalarGridSpec(
            num_scalar_prefetch=0,
            grid=(n // tp,),
            in_specs=[pl.BlockSpec((tp, d), lambda i: (i, 0)),
                      pl.BlockSpec((tp, g), lambda i: (i, 0)),
                      pl.BlockSpec((d, mp), lambda i: (0, 0)),
                      pl.BlockSpec((mp, c), lambda i: (0, 0))],
            out_specs=(pl.BlockSpec((g, d), lambda i: (0, 0)),
                       pl.BlockSpec((g, HEAD_WIDTH), lambda i: (0, 0))),
            scratch_shapes=[pltpu.VMEM((gp, d), jnp.float32)]),
        compiler_params=pltpu.CompilerParams(
            dimension_semantics=("arbitrary",),
            vmem_limit_bytes=VMEM_BUDGET),
    )(h, mask_t, pt_pad, wt_pad)


def _forward_tiled(params, x, a_bf16, mask_t, *, tm, tk, tp):
    layers = params["gnn"]
    h = x
    for li, (w, b) in enumerate(layers):
        xw = linear_tiled(h, w)
        last = li == len(layers) - 1
        h = aggregate_tiled(a_bf16, xw, b, tm=tm, tk=tk,
                            out_dtype=jnp.float32 if last else jnp.bfloat16)
    node_emb = h
    graph_emb, head = pool_head(h, mask_t, params["proto_t_pad"],
                                params["last_w_t_pad"], tp=tp)
    logits, probs, _sim, min_dist = _unpack_head(head, params)
    return logits, probs, node_emb, graph_emb, min_dist


# ---------------------------------------------------------------------------
# Public forward (enable_prot=True branch of GCNNet.forward)
# ---------------------------------------------------------------------------
def gcnnet_forward(params, x, a_hat, batch_mask, *,
                   fused_max_nodes=1024, tm=512, tk=512, tp=512):
    """Returns (logits, probs, node_emb, graph_emb, min_distances)."""
    a_bf16 = a_hat.astype(jnp.bfloat16)     # cast once: halves HBM traffic of the O(N^2) input
    mask_t = jnp.transpose(batch_mask)      # [N, G] one-hot columns
    n = x.shape[0]
    if n <= fused_max_nodes:
        return _forward_fused(params, x, a_bf16, mask_t)
    tm = min(tm, n)
    tk = min(tk, n)
    tp = min(tp, n)
    assert n % tm == 0 and n % tk == 0 and n % tp == 0, \
        "tiled path requires N divisible by the tile sizes"
    # TODO(synk): pad N up to a tile multiple instead of asserting.
    return _forward_tiled(params, x, a_bf16, mask_t, tm=tm, tk=tk, tp=tp)
    # TODO(synk): the enable_prot=False MLP/ELU/dropout branch and the protgnn_plus
    # shortcut are never reached by this configuration and are not implemented.


# ---------------------------------------------------------------------------
# Parameters, normalized adjacency, data helpers, numpy reference.
# ---------------------------------------------------------------------------
def init_params(key, input_dim, latent_dim, output_dim, num_prototypes_per_class):
    assert latent_dim[-1] == 128, "prototype_shape hard-codes 128 features"
    dims = [input_dim] + list(latent_dim)
    keys = jax.random.split(key, 2 * len(latent_dim) + 1)
    gnn = []
    for i in range(len(latent_dim)):
        w = jax.random.normal(keys[2 * i], (dims[i], dims[i + 1]), jnp.float32)
        w = w * (1.0 / np.sqrt(dims[i]))
        b = jax.random.normal(keys[2 * i + 1], (dims[i + 1],), jnp.float32) * 0.1
        gnn.append((w, b))

    m = output_dim * num_prototypes_per_class
    proto = jax.random.uniform(keys[-1], (m, 128), jnp.float32)      # torch.rand

    # set_last_layer_incorrect_connection(incorrect_strength=-0.5)
    class_id = np.zeros((m, output_dim), np.float32)
    for j in range(m):
        class_id[j, j // num_prototypes_per_class] = 1.0
    last_w = 1.0 * class_id.T + (-0.5) * (1.0 - class_id.T)          # [C, M]

    # Pad prototype count to a sublane multiple (9 -> 16).  Padded prototypes are
    # zero vectors with zero last-layer weight, so logits/probs are unchanged;
    # padded sim/dist columns are sliced off in the wrapper.
    m_pad = int(np.ceil(m / 8.0) * 8)
    proto_pad = np.zeros((m_pad, 128), np.float32)
    proto_pad[:m] = np.asarray(proto)
    last_w_pad = np.zeros((output_dim, m_pad), np.float32)
    last_w_pad[:, :m] = last_w

    return {
        "gnn": gnn,
        "proto": jnp.asarray(proto),                     # [M, 128] (reference)
        "last_w": jnp.asarray(last_w),                   # [C, M]   (reference)
        "proto_t_pad": jnp.asarray(proto_pad.T),         # [128, Mp]
        "last_w_t_pad": jnp.asarray(last_w_pad.T),       # [Mp, C]
    }


def build_normalized_adjacency(edge_index, num_nodes):
    src = edge_index[0]
    dst = edge_index[1]
    a = jnp.zeros((num_nodes, num_nodes), jnp.float32).at[dst, src].add(1.0)
    a = a + jnp.eye(num_nodes, dtype=jnp.float32)        # add self-loops
    deg = jnp.sum(a, axis=1)
    dinv = 1.0 / jnp.sqrt(deg)
    return a * dinv[:, None] * dinv[None, :]             # D^-1/2 (A+I) D^-1/2


def make_ring_batch(num_graphs, nodes_per_graph):
    edges = []
    for g in range(num_graphs):
        off = g * nodes_per_graph
        for i in range(nodes_per_graph):
            j = (i + 1) % nodes_per_graph
            edges.append((off + i, off + j))
            edges.append((off + j, off + i))
    edge_index = jnp.asarray(np.array(edges, dtype=np.int32).T)
    batch = np.repeat(np.arange(num_graphs), nodes_per_graph)
    mask = (batch[None, :] == np.arange(num_graphs)[:, None]).astype(np.float32)
    return edge_index, jnp.asarray(mask)


def reference_forward(x, a_hat, mask_gn, params):
    h = np.asarray(x, np.float64)
    A = np.asarray(a_hat, np.float64)
    for w, b in params["gnn"]:
        h = A @ (h @ np.asarray(w, np.float64)) + np.asarray(b, np.float64)
        nrm = np.sqrt((h * h).sum(-1, keepdims=True))
        h = h / np.maximum(nrm, EPS_L2)
        h = np.maximum(h, 0.0)
    m = np.asarray(mask_gn)
    G = m.shape[0]
    ge = np.stack([h[m[g] > 0.5].max(axis=0) for g in range(G)], axis=0)
    P = np.asarray(params["proto"], np.float64)
    xp = ge @ P.T
    dist = -2 * xp + (ge * ge).sum(1, keepdims=True) + (P * P).sum(1, keepdims=True).T
    sim = np.log((dist + 1.0) / (dist + EPS_PROTO))
    W = np.asarray(params["last_w"], np.float64)
    logits = sim @ W.T
    e = np.exp(logits - logits.max(-1, keepdims=True))
    probs = e / e.sum(-1, keepdims=True)
    return logits, probs, h, ge, dist


# ---------------------------------------------------------------------------
if __name__ == "__main__":
    input_dim = 16
    latent_dim = (32, 128)
    output_dim = 3
    num_prototypes_per_class = 3

    key = jax.random.PRNGKey(0)
    kx_small, kx_large, kp = jax.random.split(key, 3)
    params = init_params(kp, input_dim, latent_dim, output_dim, num_prototypes_per_class)

    def run_case(name, num_graphs, nodes_per_graph, kx):
        n = num_graphs * nodes_per_graph
        edge_index, batch_mask = make_ring_batch(num_graphs, nodes_per_graph)
        x = jax.random.normal(kx, (n, input_dim), jnp.float32)
        a_hat = build_normalized_adjacency(edge_index, n)

        out = gcnnet_forward(params, x, a_hat, batch_mask)
        jax.block_until_ready(out)
        logits, probs, node_emb, graph_emb, min_dist = out

        r_logits, r_probs, r_node, r_graph, r_dist = reference_forward(
            x, a_hat, batch_mask, params)
        # Loose tolerances: MXU inputs are bf16 (f32 accumulation / elementwise);
        # intermediate-layer activations are stored bf16 in the tiled path.
        tol = dict(atol=5e-2, rtol=5e-2)
        assert np.all(np.isfinite(np.asarray(logits))), name
        assert np.allclose(np.asarray(node_emb), r_node, **tol), name
        assert np.allclose(np.asarray(graph_emb), r_graph, **tol), name
        assert np.allclose(np.asarray(min_dist), r_dist, **tol), name
        assert np.allclose(np.asarray(logits), r_logits, **tol), name
        assert np.allclose(np.asarray(probs), r_probs, **tol), name

    # Small instance (N=16): single fused forward kernel.
    run_case("fused", num_graphs=2, nodes_per_graph=8, kx=kx_small)
    # Larger instance (N=2048 > fused_max_nodes): tiled A_hat aggregation with
    # resident XW + 512x512 tiles, bf16 intermediates, row-tiled pool/head.
    run_case("tiled", num_graphs=4, nodes_per_graph=512, kx=kx_large)

    print("KERNEL_OK")
</pallas_src>

<mosaic_0001>
module attributes {stable_mosaic.version = 11 : i64} {
  func.func @gcnnet_fused_kernel(%arg0: memref<16x16xbf16, #tpu.memory_space<vmem>>, %arg1: memref<16x16xf32, #tpu.memory_space<vmem>>, %arg2: memref<16x32xf32, #tpu.memory_space<vmem>>, %arg3: memref<1x32xf32, #tpu.memory_space<vmem>>, %arg4: memref<32x128xf32, #tpu.memory_space<vmem>>, %arg5: memref<1x128xf32, #tpu.memory_space<vmem>>, %arg6: memref<16x2xf32, #tpu.memory_space<vmem>>, %arg7: memref<128x16xf32, #tpu.memory_space<vmem>>, %arg8: memref<16x3xf32, #tpu.memory_space<vmem>>, %arg9: memref<16x128xf32, #tpu.memory_space<vmem>>, %arg10: memref<2x128xf32, #tpu.memory_space<vmem>>, %arg11: memref<2x128xf32, #tpu.memory_space<vmem>>) attributes {dimension_semantics = [], scalar_prefetch = 0 : i64, scratch_operands = 0 : i64, tpu.core_type = #tpu.core_type<tc>} {
    %c0 = arith.constant 0 : index
    %c0_0 = arith.constant 0 : index
    %0 = vector.load %arg0[%c0, %c0_0] : memref<16x16xbf16, #tpu.memory_space<vmem>>, vector<16x16xbf16>
    %c0_1 = arith.constant 0 : index
    %c0_2 = arith.constant 0 : index
    %1 = vector.load %arg1[%c0_1, %c0_2] : memref<16x16xf32, #tpu.memory_space<vmem>>, vector<16x16xf32>
    %c0_3 = arith.constant 0 : index
    %c0_4 = arith.constant 0 : index
    %2 = vector.load %arg2[%c0_3, %c0_4] : memref<16x32xf32, #tpu.memory_space<vmem>>, vector<16x32xf32>
    %c0_5 = arith.constant 0 : index
    %c0_6 = arith.constant 0 : index
    %3 = vector.load %arg3[%c0_5, %c0_6] : memref<1x32xf32, #tpu.memory_space<vmem>>, vector<1x32xf32>
    %4 = arith.truncf %1 : vector<16x16xf32> to vector<16x16xbf16>
    %5 = arith.truncf %2 : vector<16x32xf32> to vector<16x32xbf16>
    %cst = arith.constant dense<0.000000e+00> : vector<16x32xf32>
    %6 = tpu.matmul %4, %5, %cst {dimension_numbers = #tpu.dot_dimension_numbers<[1], [0], [0], [1], [0, 0, 1, 1], [], []>} : vector<16x16xbf16>, vector<16x32xbf16>, vector<16x32xf32> -> vector<16x32xf32>
    %7 = arith.truncf %6 : vector<16x32xf32> to vector<16x32xbf16>
    %cst_7 = arith.constant dense<0.000000e+00> : vector<16x32xf32>
    %8 = tpu.matmul %0, %7, %cst_7 {dimension_numbers = #tpu.dot_dimension_numbers<[1], [0], [0], [1], [0, 0, 1, 1], [], []>} : vector<16x16xbf16>, vector<16x32xbf16>, vector<16x32xf32> -> vector<16x32xf32>
    %9 = vector.broadcast %3 : vector<1x32xf32> to vector<16x32xf32>
    %10 = arith.addf %8, %9 : vector<16x32xf32>
    %11 = arith.mulf %10, %10 : vector<16x32xf32>
    %cst_8 = arith.constant dense<0.000000e+00> : vector<16xf32>
    %12 = vector.multi_reduction <add>, %11, %cst_8 [1] : vector<16x32xf32> to vector<16xf32>
    %13 = vector.shape_cast %12 : vector<16xf32> to vector<16x1xf32>
    %cst_9 = arith.constant 1.000000e-24 : f32
    %14 = vector.broadcast %cst_9 : f32 to vector<16x1xf32>
    %15 = arith.maximumf %13, %14 : vector<16x1xf32>
    %16 = math.rsqrt %15 : vector<16x1xf32>
    %17 = vector.broadcast %16 : vector<16x1xf32> to vector<16x32xf32>
    %18 = arith.mulf %10, %17 : vector<16x32xf32>
    %cst_10 = arith.constant 0.000000e+00 : f32
    %19 = vector.broadcast %cst_10 : f32 to vector<16x32xf32>
    %20 = arith.maximumf %18, %19 : vector<16x32xf32>
    %c0_11 = arith.constant 0 : index
    %c0_12 = arith.constant 0 : index
    %21 = vector.load %arg4[%c0_11, %c0_12] : memref<32x128xf32, #tpu.memory_space<vmem>>, vector<32x128xf32>
    %c0_13 = arith.constant 0 : index
    %c0_14 = arith.constant 0 : index
    %22 = vector.load %arg5[%c0_13, %c0_14] : memref<1x128xf32, #tpu.memory_space<vmem>>, vector<1x128xf32>
    %23 = arith.truncf %20 : vector<16x32xf32> to vector<16x32xbf16>
    %24 = arith.truncf %21 : vector<32x128xf32> to vector<32x128xbf16>
    %cst_15 = arith.constant dense<0.000000e+00> : vector<16x128xf32>
    %25 = tpu.matmul %23, %24, %cst_15 {dimension_numbers = #tpu.dot_dimension_numbers<[1], [0], [0], [1], [0, 0, 1, 1], [], []>} : vector<16x32xbf16>, vector<32x128xbf16>, vector<16x128xf32> -> vector<16x128xf32>
    %26 = arith.truncf %25 : vector<16x128xf32> to vector<16x128xbf16>
    %cst_16 = arith.constant dense<0.000000e+00> : vector<16x128xf32>
    %27 = tpu.matmul %0, %26, %cst_16 {dimension_numbers = #tpu.dot_dimension_numbers<[1], [0], [0], [1], [0, 0, 1, 1], [], []>} : vector<16x16xbf16>, vector<16x128xbf16>, vector<16x128xf32> -> vector<16x128xf32>
    %28 = vector.broadcast %22 : vector<1x128xf32> to vector<16x128xf32>
    %29 = arith.addf %27, %28 : vector<16x128xf32>
    %30 = arith.mulf %29, %29 : vector<16x128xf32>
    %cst_17 = arith.constant dense<0.000000e+00> : vector<16xf32>
    %31 = vector.multi_reduction <add>, %30, %cst_17 [1] : vector<16x128xf32> to vector<16xf32>
    %32 = vector.shape_cast %31 : vector<16xf32> to vector<16x1xf32>
    %cst_18 = arith.constant 1.000000e-24 : f32
    %33 = vector.broadcast %cst_18 : f32 to vector<16x1xf32>
    %34 = arith.maximumf %32, %33 : vector<16x1xf32>
    %35 = math.rsqrt %34 : vector<16x1xf32>
    %36 = vector.broadcast %35 : vector<16x1xf32> to vector<16x128xf32>
    %37 = arith.mulf %29, %36 : vector<16x128xf32>
    %cst_19 = arith.constant 0.000000e+00 : f32
    %38 = vector.broadcast %cst_19 : f32 to vector<16x128xf32>
    %39 = arith.maximumf %37, %38 : vector<16x128xf32>
    %c0_20 = arith.constant 0 : index
    %c0_21 = arith.constant 0 : index
    %40 = vector.load %arg9[%c0_20, %c0_21] : memref<16x128xf32, #tpu.memory_space<vmem>>, vector<16x128xf32>
    tpu.vector_store %arg9[%c0_20, %c0_21], %39 {strides = array<i32>} : memref<16x128xf32, #tpu.memory_space<vmem>>, vector<16x128xf32>,
    %c0_22 = arith.constant 0 : index
    %c0_23 = arith.constant 0 : index
    %41 = vector.load %arg6[%c0_22, %c0_23] : memref<16x2xf32, #tpu.memory_space<vmem>>, vector<16x2xf32>
    %42 = vector.extract_strided_slice %41 {offsets = [0, 0], sizes = [16, 1], strides = [1, 1]} : vector<16x2xf32> to vector<16x1xf32>
    %43 = vector.broadcast %42 : vector<16x1xf32> to vector<16x128xf32>
    %44 = arith.mulf %39, %43 : vector<16x128xf32>
    %cst_24 = arith.constant dense<0xFF800000> : vector<128xf32>
    %45 = vector.multi_reduction <maximumf>, %44, %cst_24 [0] : vector<16x128xf32> to vector<128xf32>
    %46 = vector.shape_cast %45 : vector<128xf32> to vector<1x128xf32>
    %47 = vector.extract_strided_slice %41 {offsets = [0, 1], sizes = [16, 1], strides = [1, 1]} : vector<16x2xf32> to vector<16x1xf32>
    %48 = vector.broadcast %47 : vector<16x1xf32> to vector<16x128xf32>
    %49 = arith.mulf %39, %48 : vector<16x128xf32>
    %cst_25 = arith.constant dense<0xFF800000> : vector<128xf32>
    %50 = vector.multi_reduction <maximumf>, %49, %cst_25 [0] : vector<16x128xf32> to vector<128xf32>
    %51 = vector.shape_cast %50 : vector<128xf32> to vector<1x128xf32>
    %52 = tpu.concatenate %46, %51 in 0 : vector<1x128xf32>, vector<1x128xf32> -> vector<2x128xf32>
    %c0_26 = arith.constant 0 : index
    %c0_27 = arith.constant 0 : index
    %53 = vector.load %arg10[%c0_26, %c0_27] : memref<2x128xf32, #tpu.memory_space<vmem>>, vector<2x128xf32>
    tpu.vector_store %arg10[%c0_26, %c0_27], %52 {strides = array<i32>} : memref<2x128xf32, #tpu.memory_space<vmem>>, vector<2x128xf32>,
    %c0_28 = arith.constant 0 : index
    %c0_29 = arith.constant 0 : index
    %54 = vector.load %arg7[%c0_28, %c0_29] : memref<128x16xf32, #tpu.memory_space<vmem>>, vector<128x16xf32>
    %c0_30 = arith.constant 0 : index
    %c0_31 = arith.constant 0 : index
    %55 = vector.load %arg8[%c0_30, %c0_31] : memref<16x3xf32, #tpu.memory_space<vmem>>, vector<16x3xf32>
    %cst_32 = arith.constant dense<0.000000e+00> : vector<2x16xf32>
    %56 = tpu.matmul %52, %54, %cst_32 {dimension_numbers = #tpu.dot_dimension_numbers<[1], [0], [0], [1], [0, 0, 1, 1], [], []>} : vector<2x128xf32>, vector<128x16xf32>, vector<2x16xf32> -> vector<2x16xf32>
    %57 = arith.mulf %52, %52 : vector<2x128xf32>
    %cst_33 = arith.constant dense<0.000000e+00> : vector<2xf32>
    %58 = vector.multi_reduction <add>, %57, %cst_33 [1] : vector<2x128xf32> to vector<2xf32>
    %59 = vector.shape_cast %58 : vector<2xf32> to vector<2x1xf32>
    %60 = arith.mulf %54, %54 : vector<128x16xf32>
    %cst_34 = arith.constant dense<0.000000e+00> : vector<16xf32>
    %61 = vector.multi_reduction <add>, %60, %cst_34 [0] : vector<128x16xf32> to vector<16xf32>
    %62 = vector.shape_cast %61 : vector<16xf32> to vector<1x16xf32>
    %cst_35 = arith.constant -2.000000e+00 : f32
    %63 = vector.broadcast %cst_35 : f32 to vector<2x16xf32>
    %64 = arith.mulf %63, %56 : vector<2x16xf32>
    %65 = vector.broadcast %59 : vector<2x1xf32> to vector<2x16xf32>
    %66 = arith.addf %64, %65 : vector<2x16xf32>
    %67 = vector.broadcast %62 : vector<1x16xf32> to vector<2x16xf32>
    %68 = arith.addf %66, %67 : vector<2x16xf32>
    %cst_36 = arith.constant 0.000000e+00 : f32
    %69 = vector.broadcast %cst_36 : f32 to vector<2x16xf32>
    %70 = arith.maximumf %68, %69 : vector<2x16xf32>
    %cst_37 = arith.constant 1.000000e+00 : f32
    %71 = vector.broadcast %cst_37 : f32 to vector<2x16xf32>
    %72 = arith.addf %70, %71 : vector<2x16xf32>
    %cst_38 = arith.constant 9.99999974E-5 : f32
    %73 = vector.broadcast %cst_38 : f32 to vector<2x16xf32>
    %74 = arith.addf %70, %73 : vector<2x16xf32>
    %75 = arith.divf %72, %74 : vector<2x16xf32>
    %76 = math.log %75 : vector<2x16xf32>
    %cst_39 = arith.constant dense<0.000000e+00> : vector<2x3xf32>
    %77 = tpu.matmul %76, %55, %cst_39 {dimension_numbers = #tpu.dot_dimension_numbers<[1], [0], [0], [1], [0, 0, 1, 1], [], []>} : vector<2x16xf32>, vector<16x3xf32>, vector<2x3xf32> -> vector<2x3xf32>
    %cst_40 = arith.constant dense<0xFF800000> : vector<2xf32>
    %78 = vector.multi_reduction <maximumf>, %77, %cst_40 [1] : vector<2x3xf32> to vector<2xf32>
    %79 = vector.shape_cast %78 : vector<2xf32> to vector<2x1xf32>
    %80 = vector.broadcast %79 : vector<2x1xf32> to vector<2x3xf32>
    %81 = arith.subf %77, %80 : vector<2x3xf32>
    %82 = math.exp %81 : vector<2x3xf32>
    %cst_41 = arith.constant dense<0.000000e+00> : vector<2xf32>
    %83 = vector.multi_reduction <add>, %82, %cst_41 [1] : vector<2x3xf32> to vector<2xf32>
    %84 = vector.shape_cast %83 : vector<2xf32> to vector<2x1xf32>
    %85 = vector.broadcast %84 : vector<2x1xf32> to vector<2x3xf32>
    %86 = arith.divf %82, %85 : vector<2x3xf32>
    %87 = tpu.iota {dimensions = array<i32: 0>} : vector<3x128xi32>
    %88 = tpu.iota {dimensions = array<i32: 1>} : vector<3x128xi32>
    %c0_i32 = arith.constant 0 : i32
    %89 = vector.broadcast %c0_i32 : i32 to vector<3x128xi32>
    %90 = arith.addi %87, %89 : vector<3x128xi32>
    %91 = arith.cmpi eq, %88, %90 : vector<3x128xi32>
    %92 = arith.extui %91 : vector<3x128xi1> to vector<3x128xi32>
    %93 = arith.sitofp %92 : vector<3x128xi32> to vector<3x128xf32>
    %cst_42 = arith.constant dense<0.000000e+00> : vector<2x128xf32>
    %94 = tpu.matmul %77, %93, %cst_42 {dimension_numbers = #tpu.dot_dimension_numbers<[1], [0], [0], [1], [0, 0, 1, 1], [], []>} : vector<2x3xf32>, vector<3x128xf32>, vector<2x128xf32> -> vector<2x128xf32>
    %95 = tpu.iota {dimensions = array<i32: 0>} : vector<3x128xi32>
    %96 = tpu.iota {dimensions = array<i32: 1>} : vector<3x128xi32>
    %c3_i32 = arith.constant 3 : i32
    %97 = vector.broadcast %c3_i32 : i32 to vector<3x128xi32>
    %98 = arith.addi %95, %97 : vector<3x128xi32>
    %99 = arith.cmpi eq, %96, %98 : vector<3x128xi32>
    %100 = arith.extui %99 : vector<3x128xi1> to vector<3x128xi32>
    %101 = arith.sitofp %100 : vector<3x128xi32> to vector<3x128xf32>
    %cst_43 = arith.constant dense<0.000000e+00> : vector<2x128xf32>
    %102 = tpu.matmul %86, %101, %cst_43 {dimension_numbers = #tpu.dot_dimension_numbers<[1], [0], [0], [1], [0, 0, 1, 1], [], []>} : vector<2x3xf32>, vector<3x128xf32>, vector<2x128xf32> -> vector<2x128xf32>
    %103 = arith.addf %94, %102 : vector<2x128xf32>
    %104 = tpu.iota {dimensions = array<i32: 0>} : vector<16x128xi32>
    %105 = tpu.iota {dimensions = array<i32: 1>} : vector<16x128xi32>
    %c6_i32 = arith.constant 6 : i32
    %106 = vector.broadcast %c6_i32 : i32 to vector<16x128xi32>
    %107 = arith.addi %104, %106 : vector<16x128xi32>
    %108 = arith.cmpi eq, %105, %107 : vector<16x128xi32>
    %109 = arith.extui %108 : vector<16x128xi1> to vector<16x128xi32>
    %110 = arith.sitofp %109 : vector<16x128xi32> to vector<16x128xf32>
    %cst_44 = arith.constant dense<0.000000e+00> : vector<2x128xf32>
    %111 = tpu.matmul %76, %110, %cst_44 {dimension_numbers = #tpu.dot_dimension_numbers<[1], [0], [0], [1], [0, 0, 1, 1], [], []>} : vector<2x16xf32>, vector<16x128xf32>, vector<2x128xf32> -> vector<2x128xf32>
    %112 = arith.addf %103, %111 : vector<2x128xf32>
    %113 = tpu.iota {dimensions = array<i32: 0>} : vector<16x128xi32>
    %114 = tpu.iota {dimensions = array<i32: 1>} : vector<16x128xi32>
    %c22_i32 = arith.constant 22 : i32
    %115 = vector.broadcast %c22_i32 : i32 to vector<16x128xi32>
    %116 = arith.addi %113, %115 : vector<16x128xi32>
    %117 = arith.cmpi eq, %114, %116 : vector<16x128xi32>
    %118 = arith.extui %117 : vector<16x128xi1> to vector<16x128xi32>
    %119 = arith.sitofp %118 : vector<16x128xi32> to vector<16x128xf32>
    %cst_45 = arith.constant dense<0.000000e+00> : vector<2x128xf32>
    %120 = tpu.matmul %70, %119, %cst_45 {dimension_numbers = #tpu.dot_dimension_numbers<[1], [0], [0], [1], [0, 0, 1, 1], [], []>} : vector<2x16xf32>, vector<16x128xf32>, vector<2x128xf32> -> vector<2x128xf32>
    %121 = arith.addf %112, %120 : vector<2x128xf32>
    %c0_46 = arith.constant 0 : index
    %c0_47 = arith.constant 0 : index
    %122 = vector.load %arg11[%c0_46, %c0_47] : memref<2x128xf32, #tpu.memory_space<vmem>>, vector<2x128xf32>
    tpu.vector_store %arg11[%c0_46, %c0_47], %121 {strides = array<i32>} : memref<2x128xf32, #tpu.memory_space<vmem>>, vector<2x128xf32>,
    return
  }
}

</mosaic_0001>

<llo_original>
// kernel: tpu_custom_call.1
$region0: #{tpu_custom_call.1}
  #allocation0 [shape = 'u32[]', space=smem, size = 0x4, offset = 0x4, fixed_abs, tag = 'smem constant byte address 0x4 - core index']
  #allocation1 [shape = 'u32[144,128]{1,0:T(1,128)}', space=vmem, size = 0x12000, scoped, tag = 'internal scratch']
  %s0 = inlined_call_operand.vmem [shape: bf16[16,16], index: 0, kind: input, shape index: {}]
  %s1 = inlined_call_operand.vmem [shape: f32[16,16], index: 1, kind: input, shape index: {}]
  %s2 = inlined_call_operand.vmem [shape: f32[16,32], index: 2, kind: input, shape index: {}]
  %s3 = inlined_call_operand.vmem [shape: f32[1,32], index: 3, kind: input, shape index: {}]
  %s4 = inlined_call_operand.vmem [shape: f32[32,128], index: 4, kind: input, shape index: {}]
  %s5 = inlined_call_operand.vmem [shape: f32[1,128], index: 5, kind: input, shape index: {}]
  %s6 = inlined_call_operand.vmem [shape: f32[16,2], index: 6, kind: input, shape index: {}]
  %s7 = inlined_call_operand.vmem [shape: f32[128,16], index: 7, kind: input, shape index: {}]
  %s8 = inlined_call_operand.vmem [shape: f32[16,3], index: 8, kind: input, shape index: {}]
  %s9 = inlined_call_operand.hbm [shape: f32[16,128], index: 9, kind: output, shape index: {0}]
  %s10 = inlined_call_operand.hbm [shape: f32[2,128], index: 10, kind: output, shape index: {1}]
  %s11 = inlined_call_operand.hbm [shape: f32[2,128], index: 11, kind: output, shape index: {2}]
  %12 = xla_tuple %s9, %s10, %s11
  %s13 = sld [smem:[#allocation0]]
  $region62: #{tpu_custom_call.1} parent=0
    _
  %s15 = ssub.s32 1, %s13
  %s16 = scalar_select 0, %s15, %s13
  $region1: #{tpu_custom_call.1} parent=0
    #allocation2 [shape = 'u8[8192]{0}', space=vmem, size = 0x2000, scoped, tag = 'output window, operand 0, single buffered']
    #allocation3 [shape = 's32[1]{0}', space=sflag, size = 0x4, scoped, tag = 'scoped memory for tpu_custom_call.1']
    #allocation4 [shape = 'u8[1024]{0}', space=vmem, size = 0x400, scoped, tag = 'output window, operand 1, single buffered']
    #allocation5 [shape = 's32[1]{0}', space=sflag, size = 0x4, scoped, tag = 'scoped memory for tpu_custom_call.1']
    #allocation6 [shape = 'u8[1024]{0}', space=vmem, size = 0x400, scoped, tag = 'output window, operand 2, single buffered']
    %17 = vsyncpa [#allocation3], 0
    %18 = vsyncpa [#allocation5], 0
    // Predicated region
    $region2: #{tpu_custom_call.1} parent=1 // pred_check
      _
    $region3: #{tpu_custom_call.1} parent=1 // pred_check_branch
      %20 = sbr.rel (0) target = $region5
    $region4: #{tpu_custom_call.1} parent=1 // pred_region
      _
    $region5: #{tpu_custom_call.1} parent=1 // pred_fallthru
      _
    // Predicated region
    $region6: #{tpu_custom_call.1} parent=1 // pred_check
      _
    $region7: #{tpu_custom_call.1} parent=1 // pred_check_branch
      %22 = sbr.rel (0) target = $region9
    $region8: #{tpu_custom_call.1} parent=1 // pred_region
      _
    $region9: #{tpu_custom_call.1} parent=1 // pred_fallthru
      _
    // Predicated region
    $region10: #{tpu_custom_call.1} parent=1 // pred_check
      _
    $region11: #{tpu_custom_call.1} parent=1 // pred_check_branch
      %24 = sbr.rel (0) target = $region13
    $region12: #{tpu_custom_call.1} parent=1 // pred_region
      _
    $region13: #{tpu_custom_call.1} parent=1 // pred_fallthru
      _
    // Predicated region
    $region14: #{tpu_custom_call.1} parent=1 // pred_check
      _
    $region15: #{tpu_custom_call.1} parent=1 // pred_check_branch
      %26 = sbr.rel (0) target = $region17
    $region16: #{tpu_custom_call.1} parent=1 // pred_region
      _
    $region17: #{tpu_custom_call.1} parent=1 // pred_fallthru
      _
    // Predicated region
    $region18: #{tpu_custom_call.1} parent=1 // pred_check
      _
    $region19: #{tpu_custom_call.1} parent=1 // pred_check_branch
      %28 = sbr.rel (0) target = $region21
    $region20: #{tpu_custom_call.1} parent=1 // pred_region
      _
    $region21: #{tpu_custom_call.1} parent=1 // pred_fallthru
      _
    // Predicated region
    $region22: #{tpu_custom_call.1} parent=1 // pred_check
      _
    $region23: #{tpu_custom_call.1} parent=1 // pred_check_branch
      %30 = sbr.rel (0) target = $region25
    $region24: #{tpu_custom_call.1} parent=1 // pred_region
      _
    $region25: #{tpu_custom_call.1} parent=1 // pred_fallthru
      _
    // Predicated region
    $region26: #{tpu_custom_call.1} parent=1 // pred_check
      _
    $region27: #{tpu_custom_call.1} parent=1 // pred_check_branch
      %32 = sbr.rel (0) target = $region29
    $region28: #{tpu_custom_call.1} parent=1 // pred_region
      _
    $region29: #{tpu_custom_call.1} parent=1 // pred_fallthru
      _
    // Predicated region
    $region30: #{tpu_custom_call.1} parent=1 // pred_check
      _
    $region31: #{tpu_custom_call.1} parent=1 // pred_check_branch
      %34 = sbr.rel (0) target = $region33
    $region32: #{tpu_custom_call.1} parent=1 // pred_region
      _
    $region33: #{tpu_custom_call.1} parent=1 // pred_fallthru
      _
    // Predicated region
    $region34: #{tpu_custom_call.1} parent=1 // pred_check
      _
    $region35: #{tpu_custom_call.1} parent=1 // pred_check_branch
      %36 = sbr.rel (0) target = $region37
    $region36: #{tpu_custom_call.1} parent=1 // pred_region
      _
    $region37: #{tpu_custom_call.1} parent=1 // pred_fallthru
      _
    %v38 = vld [vmem:[%s0] sm:$0xf]
    %v39 = vld [vmem:[%s0 + $0x4] sm:$0xf]
    %v40 = vld [vmem:[%s1] sm:$0xff]
    %v41 = vld [vmem:[%s1 + $0x8] sm:$0xff]
    %v42 = vld [vmem:[%s2] sm:$0xff]
    %v43 = vld [vmem:[%s2 + $0x8] sm:$0xff]
    %v44 = vld [vmem:[%s3] sm:$0x1]
    %v45 = vpack.c.bf16 %v41, %v40
    %v46 = vpack.c.bf16 %v43, %v42
    %vm47 = vcmask 130048
    %v49 = vsel %vm47, %v45, 0
    %51 = vmatprep.subr.bf16.mxu0 0
    %52 = vmatpush1.bf16.msra.mxu0 0
    %53 = vmatprep.subr.bf16.mxu0 0
    %54 = vmatpush1.bf16.msra.mxu0 0
    %55 = vmatprep.subr.bf16.mxu0 0
    %56 = vmatpush1.bf16.msra.mxu0 0
    %57 = vmatprep.subr.bf16.mxu0 0
    %58 = vmatpush1.bf16.msra.mxu0 0
    %59 = vmatprep.subr.bf16.mxu0 0
    %60 = vmatpush1.bf16.msra.mxu0 0
    %61 = vmatprep.subr.bf16.mxu0 0
    %62 = vmatpush1.bf16.msra.mxu0 0
    %63 = vmatprep.subr.bf16.mxu0 0
    %64 = vmatpush1.bf16.msra.mxu0 0
    %65 = vmatprep.subr.bf16.mxu0 0
    %66 = vmatpush1.bf16.msra.mxu0 %v46
    %67 = vmatprep.subr.bf16.mxu0 0
    %68 = vmatpush2.bf16.msra.mxu0 0
    %69 = vmatprep.subr.bf16.mxu0 0
    %70 = vmatpush2.bf16.msra.mxu0 0
    %71 = vmatprep.subr.bf16.mxu0 0
    %72 = vmatpush2.bf16.msra.mxu0 0
    %73 = vmatprep.subr.bf16.mxu0 0
    %74 = vmatpush2.bf16.msra.mxu0 0
    %75 = vmatprep.subr.bf16.mxu0 0
    %76 = vmatpush2.bf16.msra.mxu0 0
    %77 = vmatprep.subr.bf16.mxu0 0
    %78 = vmatpush2.bf16.msra.mxu0 0
    %79 = vmatprep.subr.bf16.mxu0 0
    %80 = vmatpush2.bf16.msra.mxu0 0
    %81 = vmatprep.subr.bf16.mxu0 0
    %82 = vmatpush2.bf16.msra.mxu0 0
    %83 = vmatprep.mubr.bf16.mxu0 0
    %84 = vmatmul.mubr.bf16.gmra.mxu0 %v49
    %v85 = vpop.f32.mrf.mxu0
    %v86 = vadd.f32 0.0, %v85
    %v87 = vpop.f32.mrf.mxu0
    %v88 = vpop.f32.mrf.mxu0
    %v89 = vadd.f32 0.0, %v88
    %v90 = vpop.f32.mrf.mxu0
    %91 = vdwg.mxu0
    %v92 = vpack.c.bf16 %v89, %v86
    %v94 = vlaneseq
    %v95 = vshrl.u32 %v94, 7
    %v96 = vsub.s32 0, %v95
    %v97 = vrot.slane %v44, %v96
    %v101 = vunpack.c.l.b16 %v38
    %v102 = vunpack.c.l.b16 %v39
    %v103 = vpack.c.b16 %v102, %v101
    %v105 = vsel %vm47, %v103, 0
    %107 = vmatprep.subr.bf16.mxu0 0
    %108 = vmatpush1.bf16.msra.mxu0 0
    %109 = vmatprep.subr.bf16.mxu0 0
    %110 = vmatpush1.bf16.msra.mxu0 0
    %111 = vmatprep.subr.bf16.mxu0 0
    %112 = vmatpush1.bf16.msra.mxu0 0
    %113 = vmatprep.subr.bf16.mxu0 0
    %114 = vmatpush1.bf16.msra.mxu0 0
    %115 = vmatprep.subr.bf16.mxu0 0
    %116 = vmatpush1.bf16.msra.mxu0 0
    %117 = vmatprep.subr.bf16.mxu0 0
    %118 = vmatpush1.bf16.msra.mxu0 0
    %119 = vmatprep.subr.bf16.mxu0 0
    %120 = vmatpush1.bf16.msra.mxu0 0
    %121 = vmatprep.subr.bf16.mxu0 0
    %122 = vmatpush1.bf16.msra.mxu0 %v92
    %123 = vmatprep.subr.bf16.mxu0 0
    %124 = vmatpush2.bf16.msra.mxu0 0
    %125 = vmatprep.subr.bf16.mxu0 0
    %126 = vmatpush2.bf16.msra.mxu0 0
    %127 = vmatprep.subr.bf16.mxu0 0
    %128 = vmatpush2.bf16.msra.mxu0 0
    %129 = vmatprep.subr.bf16.mxu0 0
    %130 = vmatpush2.bf16.msra.mxu0 0
    %131 = vmatprep.subr.bf16.mxu0 0
    %132 = vmatpush2.bf16.msra.mxu0 0
    %133 = vmatprep.subr.bf16.mxu0 0
    %134 = vmatpush2.bf16.msra.mxu0 0
    %135 = vmatprep.subr.bf16.mxu0 0
    %136 = vmatpush2.bf16.msra.mxu0 0
    %137 = vmatprep.subr.bf16.mxu0 0
    %138 = vmatpush2.bf16.msra.mxu0 0
    %139 = vmatprep.mubr.bf16.mxu0 0
    %140 = vmatmul.mubr.bf16.gmra.mxu0 %v105
    %v141 = vpop.f32.mrf.mxu0
    %v142 = vadd.f32 %v97, %v141
    %v143 = vpop.f32.mrf.mxu0
    %v144 = vpop.f32.mrf.mxu0
    %v145 = vadd.f32 %v97, %v144
    %v146 = vpop.f32.mrf.mxu0
    %147 = vdwg.mxu0
    %v148 = vmul.f32 %v142, %v142
    %v149 = vmul.f32 %v145, %v145
    %vm150 = vcmask 261120
    %v151 = vsel %vm150, %v148, 0.0
    %152 = vadd.xlane.f32.xlu0 %v151
    %v153 = vpop.xlane.xlu0 %152
    %v154 = vsel %vm150, %v149, 0.0
    %155 = vadd.xlane.f32.xlu0 %v154
    %v156 = vpop.xlane.xlu0 %155
    %v157 = vmax.f32 %v153, 1e-24
    %v158 = vmax.f32 %v156, 1e-24
    %v159 = vrsqrt.pop %v157
    %v160 = vrsqrt.pop %v158
    %v161 = vmul.f32 %v142, %v159
    %v162 = vmul.f32 %v145, %v160
    %v163 = vmax.f32 %v161, 0.0
    %v164 = vmax.f32 %v162, 0.0
    %v165 = vld [vmem:[%s4] sm:$0xff]
    %v166 = vld [vmem:[%s4 + $0x8] sm:$0xff]
    %v167 = vld [vmem:[%s4 + $0x10] sm:$0xff]
    %v168 = vld [vmem:[%s4 + $0x18] sm:$0xff]
    %v169 = vld [vmem:[%s5] sm:$0x1]
    %v170 = vpack.c.bf16 %v164, %v163
    %v171 = vpack.c.bf16 %v166, %v165
    %v172 = vpack.c.bf16 %v168, %v167
    %v174 = vsel %vm150, %v170, 0
    %176 = vmatprep.subr.bf16.mxu0 0
    %177 = vmatpush1.bf16.msra.mxu0 0
    %178 = vmatprep.subr.bf16.mxu0 0
    %179 = vmatpush1.bf16.msra.mxu0 0
    %180 = vmatprep.subr.bf16.mxu0 0
    %181 = vmatpush1.bf16.msra.mxu0 0
    %182 = vmatprep.subr.bf16.mxu0 0
    %183 = vmatpush1.bf16.msra.mxu0 0
    %184 = vmatprep.subr.bf16.mxu0 0
    %185 = vmatpush1.bf16.msra.mxu0 0
    %186 = vmatprep.subr.bf16.mxu0 0
    %187 = vmatpush1.bf16.msra.mxu0 0
    %188 = vmatprep.subr.bf16.mxu0 0
    %189 = vmatpush1.bf16.msra.mxu0 %v172
    %190 = vmatprep.subr.bf16.mxu0 0
    %191 = vmatpush1.bf16.msra.mxu0 %v171
    %192 = vmatprep.subr.bf16.mxu0 0
    %193 = vmatpush2.bf16.msra.mxu0 0
    %194 = vmatprep.subr.bf16.mxu0 0
    %195 = vmatpush2.bf16.msra.mxu0 0
    %196 = vmatprep.subr.bf16.mxu0 0
    %197 = vmatpush2.bf16.msra.mxu0 0
    %198 = vmatprep.subr.bf16.mxu0 0
    %199 = vmatpush2.bf16.msra.mxu0 0
    %200 = vmatprep.subr.bf16.mxu0 0
    %201 = vmatpush2.bf16.msra.mxu0 0
    %202 = vmatprep.subr.bf16.mxu0 0
    %203 = vmatpush2.bf16.msra.mxu0 0
    %204 = vmatprep.subr.bf16.mxu0 0
    %205 = vmatpush2.bf16.msra.mxu0 0
    %206 = vmatprep.subr.bf16.mxu0 0
    %207 = vmatpush2.bf16.msra.mxu0 0
    %208 = vmatprep.mubr.bf16.mxu0 0
    %209 = vmatmul.mubr.bf16.gmra.mxu0 %v174
    %v210 = vpop.f32.mrf.mxu0
    %v211 = vadd.f32 0.0, %v210
    %v212 = vpop.f32.mrf.mxu0
    %v213 = vpop.f32.mrf.mxu0
    %v214 = vadd.f32 0.0, %v213
    %v215 = vpop.f32.mrf.mxu0
    %216 = vdwg.mxu0
    %v217 = vpack.c.bf16 %v214, %v211
    %v219 = vlaneseq
    %v220 = vshrl.u32 %v219, 7
    %v221 = vsub.s32 0, %v220
    %v222 = vrot.slane %v169, %v221
    %224 = vmatprep.subr.bf16.mxu0 0
    %225 = vmatpush1.bf16.msra.mxu0 0
    %226 = vmatprep.subr.bf16.mxu0 0
    %227 = vmatpush1.bf16.msra.mxu0 0
    %228 = vmatprep.subr.bf16.mxu0 0
    %229 = vmatpush1.bf16.msra.mxu0 0
    %230 = vmatprep.subr.bf16.mxu0 0
    %231 = vmatpush1.bf16.msra.mxu0 0
    %232 = vmatprep.subr.bf16.mxu0 0
    %233 = vmatpush1.bf16.msra.mxu0 0
    %234 = vmatprep.subr.bf16.mxu0 0
    %235 = vmatpush1.bf16.msra.mxu0 0
    %236 = vmatprep.subr.bf16.mxu0 0
    %237 = vmatpush1.bf16.msra.mxu0 0
    %238 = vmatprep.subr.bf16.mxu0 0
    %239 = vmatpush1.bf16.msra.mxu0 %v217
    %240 = vmatprep.subr.bf16.mxu0 0
    %241 = vmatpush2.bf16.msra.mxu0 0
    %242 = vmatprep.subr.bf16.mxu0 0
    %243 = vmatpush2.bf16.msra.mxu0 0
    %244 = vmatprep.subr.bf16.mxu0 0
    %245 = vmatpush2.bf16.msra.mxu0 0
    %246 = vmatprep.subr.bf16.mxu0 0
    %247 = vmatpush2.bf16.msra.mxu0 0
    %248 = vmatprep.subr.bf16.mxu0 0
    %249 = vmatpush2.bf16.msra.mxu0 0
    %250 = vmatprep.subr.bf16.mxu0 0
    %251 = vmatpush2.bf16.msra.mxu0 0
    %252 = vmatprep.subr.bf16.mxu0 0
    %253 = vmatpush2.bf16.msra.mxu0 0
    %254 = vmatprep.subr.bf16.mxu0 0
    %255 = vmatpush2.bf16.msra.mxu0 0
    %256 = vmatprep.mubr.bf16.mxu0 0
    %257 = vmatmul.mubr.bf16.gmra.mxu0 %v105
    %v258 = vpop.f32.mrf.mxu0
    %v259 = vadd.f32 %v222, %v258
    %v260 = vpop.f32.mrf.mxu0
    %v261 = vpop.f32.mrf.mxu0
    %v262 = vadd.f32 %v222, %v261
    %v263 = vpop.f32.mrf.mxu0
    %264 = vdwg.mxu0
    %v265 = vmul.f32 %v259, %v259
    %v266 = vmul.f32 %v262, %v262
    %267 = vadd.xlane.f32.xlu0 %v265
    %v268 = vpop.xlane.xlu0 %267
    %269 = vadd.xlane.f32.xlu0 %v266
    %v270 = vpop.xlane.xlu0 %269
    %v271 = vmax.f32 %v268, 1e-24
    %v272 = vmax.f32 %v270, 1e-24
    %v273 = vrsqrt.pop %v271
    %v274 = vrsqrt.pop %v272
    %v275 = vmul.f32 %v259, %v273
    %v276 = vmul.f32 %v262, %v274
    %v277 = vmax.f32 %v275, 0.0
    %v278 = vmax.f32 %v276, 0.0
    %279 = vst [vmem:[#allocation2] sm:$0xff] %v277
    %280 = vst [vmem:[#allocation2 + $0x8] sm:$0xff] %v278
    %v281 = vld [vmem:[%s6] sm:$0xff]
    %v282 = vld [vmem:[%s6 + $0x8] sm:$0xff]
    %284 = vset.pattern.permute.xlu0 0
    %285 = vperm.xlu0 %284, %v281
    %v286 = vpop.permute.xlu0 %285
    %289 = vset.pattern.permute.xlu0 0
    %290 = vperm.xlu0 %289, %v282
    %v291 = vpop.permute.xlu0 %290
    %v293 = vmul.f32 %v277, %v286
    %v294 = vmul.f32 %v278, %v291
    %v295 = vmax.f32 %v293, %v294
    %v296 = vrot.slane %v295, 4
    %v297 = vmax.f32 %v295, %v296
    %v298 = vrot.slane %v297, 2
    %v299 = vmax.f32 %v297, %v298
    %v300 = vrot.slane %v299, 1
    %v301 = vmax.f32 %v299, %v300
    %302 = vset.pattern.permute.xlu0 1
    %303 = vperm.xlu0 %302, %v281
    %v304 = vpop.permute.xlu0 %303
    %306 = vset.pattern.permute.xlu0 1
    %307 = vperm.xlu0 %306, %v282
    %v308 = vpop.permute.xlu0 %307
    %v310 = vmul.f32 %v277, %v304
    %v311 = vmul.f32 %v278, %v308
    %v312 = vmax.f32 %v310, %v311
    %v313 = vrot.slane %v312, 4
    %v314 = vmax.f32 %v312, %v313
    %v315 = vrot.slane %v314, 2
    %v316 = vmax.f32 %v314, %v315
    %v317 = vrot.slane %v316, 1
    %v318 = vmax.f32 %v316, %v317
    %vm319 = vcmask 1040384
    %v320 = vsel %vm319, %v301, %v318
    %321 = vst [vmem:[#allocation4] sm:$0x3] %v320
    %v322 = vld [vmem:[%s7] sm:$0xff]
    %v323 = vld [vmem:[%s7 + $0x8] sm:$0xff]
    %v324 = vld [vmem:[%s7 + $0x10] sm:$0xff]
    %v325 = vld [vmem:[%s7 + $0x18] sm:$0xff]
    %v326 = vld [vmem:[%s7 + $0x20] sm:$0xff]
    %v327 = vld [vmem:[%s7 + $0x28] sm:$0xff]
    %v328 = vld [vmem:[%s7 + $0x30] sm:$0xff]
    %v329 = vld [vmem:[%s7 + $0x38] sm:$0xff]
    %v330 = vld [vmem:[%s7 + $0x40] sm:$0xff]
    %v331 = vld [vmem:[%s7 + $0x48] sm:$0xff]
    %v332 = vld [vmem:[%s7 + $0x50] sm:$0xff]
    %v333 = vld [vmem:[%s7 + $0x58] sm:$0xff]
    %v334 = vld [vmem:[%s7 + $0x60] sm:$0xff]
    %v335 = vld [vmem:[%s7 + $0x68] sm:$0xff]
    %v336 = vld [vmem:[%s7 + $0x70] sm:$0xff]
    %v337 = vld [vmem:[%s7 + $0x78] sm:$0xff]
    %v338 = vld [vmem:[%s8] sm:$0xff]
    %v339 = vld [vmem:[%s8 + $0x8] sm:$0xff]
    %340 = vmatprep.subr.mxu0 0.0
    %341 = vmatpush1.msra.mxu0 %v337
    %342 = vmatprep.subr.mxu0 0.0
    %343 = vmatpush1.msra.mxu0 %v336
    %344 = vmatprep.subr.mxu0 0.0
    %345 = vmatpush1.msra.mxu0 %v335
    %346 = vmatprep.subr.mxu0 0.0
    %347 = vmatpush1.msra.mxu0 %v334
    %348 = vmatprep.subr.mxu0 0.0
    %349 = vmatpush1.msra.mxu0 %v333
    %350 = vmatprep.subr.mxu0 0.0
    %351 = vmatpush1.msra.mxu0 %v332
    %352 = vmatprep.subr.mxu0 0.0
    %353 = vmatpush1.msra.mxu0 %v331
    %354 = vmatprep.subr.mxu0 0.0
    %355 = vmatpush1.msra.mxu0 %v330
    %356 = vmatprep.subr.mxu0 0.0
    %357 = vmatpush1.msra.mxu0 %v329
    %358 = vmatprep.subr.mxu0 0.0
    %359 = vmatpush1.msra.mxu0 %v328
    %360 = vmatprep.subr.mxu0 0.0
    %361 = vmatpush1.msra.mxu0 %v327
    %362 = vmatprep.subr.mxu0 0.0
    %363 = vmatpush1.msra.mxu0 %v326
    %364 = vmatprep.subr.mxu0 0.0
    %365 = vmatpush1.msra.mxu0 %v325
    %366 = vmatprep.subr.mxu0 0.0
    %367 = vmatpush1.msra.mxu0 %v324
    %368 = vmatprep.subr.mxu0 0.0
    %369 = vmatpush1.msra.mxu0 %v323
    %370 = vmatprep.subr.mxu0 0.0
    %371 = vmatpush1.msra.mxu0 %v322
    %372 = vmatprep.subr.mxu0 0.0
    %373 = vmatpush2.msra.mxu0 0.0
    %374 = vmatprep.subr.mxu0 0.0
    %375 = vmatpush2.msra.mxu0 0.0
    %376 = vmatprep.subr.mxu0 0.0
    %377 = vmatpush2.msra.mxu0 0.0
    %378 = vmatprep.subr.mxu0 0.0
    %379 = vmatpush2.msra.mxu0 0.0
    %380 = vmatprep.subr.mxu0 0.0
    %381 = vmatpush2.msra.mxu0 0.0
    %382 = vmatprep.subr.mxu0 0.0
    %383 = vmatpush2.msra.mxu0 0.0
    %384 = vmatprep.subr.mxu0 0.0
    %385 = vmatpush2.msra.mxu0 0.0
    %386 = vmatprep.subr.mxu0 0.0
    %387 = vmatpush2.msra.mxu0 0.0
    %388 = vmatprep.subr.mxu0 0.0
    %389 = vmatpush2.msra.mxu0 0.0
    %390 = vmatprep.subr.mxu0 0.0
    %391 = vmatpush2.msra.mxu0 0.0
    %392 = vmatprep.subr.mxu0 0.0
    %393 = vmatpush2.msra.mxu0 0.0
    %394 = vmatprep.subr.mxu0 0.0
    %395 = vmatpush2.msra.mxu0 0.0
    %396 = vmatprep.subr.mxu0 0.0
    %397 = vmatpush2.msra.mxu0 0.0
    %398 = vmatprep.subr.mxu0 0.0
    %399 = vmatpush2.msra.mxu0 0.0
    %400 = vmatprep.subr.mxu0 0.0
    %401 = vmatpush2.msra.mxu0 0.0
    %402 = vmatprep.subr.mxu0 0.0
    %403 = vmatpush2.msra.mxu0 0.0
    %404 = vmatprep.mubr.f32.mxu0 0.0
    %405 = vmatmul.mubr.f32.gmra.mxu0 %v320
    %v406 = vpop.f32.mrf.mxu0
    %v407 = vadd.f32 0.0, %v406
    %v408 = vpop.f32.mrf.mxu0
    %409 = vdwg.mxu0
    %v410 = vmul.f32 %v320, %v320
    %vm411 = vcmask 1041408
    %v412 = vsel %vm411, %v410, 0.0
    %413 = vadd.xlane.f32.xlu0 %v412
    %v414 = vpop.xlane.xlu0 %413
    %v415 = vmul.f32 %v322, %v322
    %v416 = vmul.f32 %v323, %v323
    %v417 = vmul.f32 %v324, %v324
    %v418 = vmul.f32 %v325, %v325
    %v419 = vmul.f32 %v326, %v326
    %v420 = vmul.f32 %v327, %v327
    %v421 = vmul.f32 %v328, %v328
    %v422 = vmul.f32 %v329, %v329
    %v423 = vmul.f32 %v330, %v330
    %v424 = vmul.f32 %v331, %v331
    %v425 = vmul.f32 %v332, %v332
    %v426 = vmul.f32 %v333, %v333
    %v427 = vmul.f32 %v334, %v334
    %v428 = vmul.f32 %v335, %v335
    %v429 = vmul.f32 %v336, %v336
    %v430 = vmul.f32 %v337, %v337
    %v431 = vsel %vm47, %v415, 0.0
    %v432 = vsel %vm47, %v416, 0.0
    %v433 = vadd.f32 %v431, %v432
    %v434 = vsel %vm47, %v417, 0.0
    %v435 = vadd.f32 %v433, %v434
    %v436 = vsel %vm47, %v418, 0.0
    %v437 = vadd.f32 %v435, %v436
    %v438 = vsel %vm47, %v419, 0.0
    %v439 = vadd.f32 %v437, %v438
    %v440 = vsel %vm47, %v420, 0.0
    %v441 = vadd.f32 %v439, %v440
    %v442 = vsel %vm47, %v421, 0.0
    %v443 = vadd.f32 %v441, %v442
    %v444 = vsel %vm47, %v422, 0.0
    %v445 = vadd.f32 %v443, %v444
    %v446 = vsel %vm47, %v423, 0.0
    %v447 = vadd.f32 %v445, %v446
    %v448 = vsel %vm47, %v424, 0.0
    %v449 = vadd.f32 %v447, %v448
    %v450 = vsel %vm47, %v425, 0.0
    %v451 = vadd.f32 %v449, %v450
    %v452 = vsel %vm47, %v426, 0.0
    %v453 = vadd.f32 %v451, %v452
    %v454 = vsel %vm47, %v427, 0.0
    %v455 = vadd.f32 %v453, %v454
    %v456 = vsel %vm47, %v428, 0.0
    %v457 = vadd.f32 %v455, %v456
    %v458 = vsel %vm47, %v429, 0.0
    %v459 = vadd.f32 %v457, %v458
    %v460 = vsel %vm47, %v430, 0.0
    %v461 = vadd.f32 %v459, %v460
    %v462 = vrot.slane %v461, 4
    %v463 = vadd.f32 %v461, %v462
    %v464 = vrot.slane %v463, 2
    %v465 = vadd.f32 %v463, %v464
    %v466 = vrot.slane %v465, 1
    %v467 = vadd.f32 %v465, %v466
    %v468 = vmul.f32 %v407, -2.0
    %v469 = vadd.f32 %v468, %v414
    %v470 = vadd.f32 %v469, %v467
    %v471 = vmax.f32 %v470, 0.0
    %v472 = vadd.f32 %v471, 1.0
    %v473 = vadd.f32 %v471, 0.0001
    %v474 = vrcp.pop %v473
    %v475 = vmul.f32 %v472, %v474
    %v476 = vlog2.pop %v475
    %v477 = vmul.f32 %v476, 0.6931472
    %v479 = vsel %vm47, %v477, 0
    %481 = vmatprep.subr.mxu0 0.0
    %482 = vmatpush1.msra.mxu0 0.0
    %483 = vmatprep.subr.mxu0 0.0
    %484 = vmatpush1.msra.mxu0 0.0
    %485 = vmatprep.subr.mxu0 0.0
    %486 = vmatpush1.msra.mxu0 0.0
    %487 = vmatprep.subr.mxu0 0.0
    %488 = vmatpush1.msra.mxu0 0.0
    %489 = vmatprep.subr.mxu0 0.0
    %490 = vmatpush1.msra.mxu0 0.0
    %491 = vmatprep.subr.mxu0 0.0
    %492 = vmatpush1.msra.mxu0 0.0
    %493 = vmatprep.subr.mxu0 0.0
    %494 = vmatpush1.msra.mxu0 0.0
    %495 = vmatprep.subr.mxu0 0.0
    %496 = vmatpush1.msra.mxu0 0.0
    %497 = vmatprep.subr.mxu0 0.0
    %498 = vmatpush1.msra.mxu0 0.0
    %499 = vmatprep.subr.mxu0 0.0
    %500 = vmatpush1.msra.mxu0 0.0
    %501 = vmatprep.subr.mxu0 0.0
    %502 = vmatpush1.msra.mxu0 0.0
    %503 = vmatprep.subr.mxu0 0.0
    %504 = vmatpush1.msra.mxu0 0.0
    %505 = vmatprep.subr.mxu0 0.0
    %506 = vmatpush1.msra.mxu0 0.0
    %507 = vmatprep.subr.mxu0 0.0
    %508 = vmatpush1.msra.mxu0 0.0
    %509 = vmatprep.subr.mxu0 0.0
    %510 = vmatpush1.msra.mxu0 %v339
    %511 = vmatprep.subr.mxu0 0.0
    %512 = vmatpush1.msra.mxu0 %v338
    %513 = vmatprep.subr.mxu0 0.0
    %514 = vmatpush2.msra.mxu0 0.0
    %515 = vmatprep.subr.mxu0 0.0
    %516 = vmatpush2.msra.mxu0 0.0
    %517 = vmatprep.subr.mxu0 0.0
    %518 = vmatpush2.msra.mxu0 0.0
    %519 = vmatprep.subr.mxu0 0.0
    %520 = vmatpush2.msra.mxu0 0.0
    %521 = vmatprep.subr.mxu0 0.0
    %522 = vmatpush2.msra.mxu0 0.0
    %523 = vmatprep.subr.mxu0 0.0
    %524 = vmatpush2.msra.mxu0 0.0
    %525 = vmatprep.subr.mxu0 0.0
    %526 = vmatpush2.msra.mxu0 0.0
    %527 = vmatprep.subr.mxu0 0.0
    %528 = vmatpush2.msra.mxu0 0.0
    %529 = vmatprep.subr.mxu0 0.0
    %530 = vmatpush2.msra.mxu0 0.0
    %531 = vmatprep.subr.mxu0 0.0
    %532 = vmatpush2.msra.mxu0 0.0
    %533 = vmatprep.subr.mxu0 0.0
    %534 = vmatpush2.msra.mxu0 0.0
    %535 = vmatprep.subr.mxu0 0.0
    %536 = vmatpush2.msra.mxu0 0.0
    %537 = vmatprep.subr.mxu0 0.0
    %538 = vmatpush2.msra.mxu0 0.0
    %539 = vmatprep.subr.mxu0 0.0
    %540 = vmatpush2.msra.mxu0 0.0
    %541 = vmatprep.subr.mxu0 0.0
    %542 = vmatpush2.msra.mxu0 0.0
    %543 = vmatprep.subr.mxu0 0.0
    %544 = vmatpush2.msra.mxu0 0.0
    %545 = vmatprep.mubr.f32.mxu0 0.0
    %546 = vmatmul.mubr.f32.gmra.mxu0 %v479
    %v547 = vpop.f32.mrf.mxu0
    %v548 = vadd.f32 0.0, %v547
    %v549 = vpop.f32.mrf.mxu0
    %550 = vdwg.mxu0
    %vm551 = vcmask 17408
    %v552 = vsel %vm551, %v548, -inf
    %553 = vmax.xlane.f32.xlu0 %v552
    %v554 = vpop.xlane.xlu0 %553
    %v555 = vsub.f32 %v548, %v554
    %v556 = vmul.f32 %v555, 1.442695
    %v557 = vpow.pop %v556
    %v558 = vsel %vm551, %v557, 0.0
    %559 = vadd.xlane.f32.xlu0 %v558
    %v560 = vpop.xlane.xlu0 %559
    %v561 = vrcp.pop %v560
    %v562 = vmul.f32 %v557, %v561
    %v563 = vlaneseq
    %v564 = vshrl.u32 %v563, 7
    %v565 = vlaneseq
    %v566 = vand.u32 %v565, 127
    %vm567 = vcmp.eq.s32.totalorder %v566, %v564
    %v568 = vsel %vm567, 1, 0
    %v569 = vcvt.s32.f32 %v568
    %v570 = vadd.s32 %v564, 3
    %vm571 = vcmp.eq.s32.totalorder %v566, %v570
    %v572 = vsel %vm571, 1, 0
    %v573 = vcvt.s32.f32 %v572
    %vm574 = vcmask 23552
    %v576 = vsel %vm574, %v562, 0
    %vm578 = vcmask 1042432
    %v580 = vsel %vm578, %v573, 0
    %582 = vmatprep.subr.mxu0 0.0
    %583 = vmatpush1.msra.mxu0 0.0
    %584 = vmatprep.subr.mxu0 0.0
    %585 = vmatpush1.msra.mxu0 0.0
    %586 = vmatprep.subr.mxu0 0.0
    %587 = vmatpush1.msra.mxu0 0.0
    %588 = vmatprep.subr.mxu0 0.0
    %589 = vmatpush1.msra.mxu0 0.0
    %590 = vmatprep.subr.mxu0 0.0
    %591 = vmatpush1.msra.mxu0 0.0
    %592 = vmatprep.subr.mxu0 0.0
    %593 = vmatpush1.msra.mxu0 0.0
    %594 = vmatprep.subr.mxu0 0.0
    %595 = vmatpush1.msra.mxu0 0.0
    %596 = vmatprep.subr.mxu0 0.0
    %597 = vmatpush1.msra.mxu0 0.0
    %598 = vmatprep.subr.mxu0 0.0
    %599 = vmatpush1.msra.mxu0 0.0
    %600 = vmatprep.subr.mxu0 0.0
    %601 = vmatpush1.msra.mxu0 0.0
    %602 = vmatprep.subr.mxu0 0.0
    %603 = vmatpush1.msra.mxu0 0.0
    %604 = vmatprep.subr.mxu0 0.0
    %605 = vmatpush1.msra.mxu0 0.0
    %606 = vmatprep.subr.mxu0 0.0
    %607 = vmatpush1.msra.mxu0 0.0
    %608 = vmatprep.subr.mxu0 0.0
    %609 = vmatpush1.msra.mxu0 0.0
    %610 = vmatprep.subr.mxu0 0.0
    %611 = vmatpush1.msra.mxu0 0.0
    %612 = vmatprep.subr.mxu0 0.0
    %613 = vmatpush1.msra.mxu0 %v580
    %614 = vmatprep.subr.mxu0 0.0
    %615 = vmatpush2.msra.mxu0 0.0
    %616 = vmatprep.subr.mxu0 0.0
    %617 = vmatpush2.msra.mxu0 0.0
    %618 = vmatprep.subr.mxu0 0.0
    %619 = vmatpush2.msra.mxu0 0.0
    %620 = vmatprep.subr.mxu0 0.0
    %621 = vmatpush2.msra.mxu0 0.0
    %622 = vmatprep.subr.mxu0 0.0
    %623 = vmatpush2.msra.mxu0 0.0
    %624 = vmatprep.subr.mxu0 0.0
    %625 = vmatpush2.msra.mxu0 0.0
    %626 = vmatprep.subr.mxu0 0.0
    %627 = vmatpush2.msra.mxu0 0.0
    %628 = vmatprep.subr.mxu0 0.0
    %629 = vmatpush2.msra.mxu0 0.0
    %630 = vmatprep.subr.mxu0 0.0
    %631 = vmatpush2.msra.mxu0 0.0
    %632 = vmatprep.subr.mxu0 0.0
    %633 = vmatpush2.msra.mxu0 0.0
    %634 = vmatprep.subr.mxu0 0.0
    %635 = vmatpush2.msra.mxu0 0.0
    %636 = vmatprep.subr.mxu0 0.0
    %637 = vmatpush2.msra.mxu0 0.0
    %638 = vmatprep.subr.mxu0 0.0
    %639 = vmatpush2.msra.mxu0 0.0
    %640 = vmatprep.subr.mxu0 0.0
    %641 = vmatpush2.msra.mxu0 0.0
    %642 = vmatprep.subr.mxu0 0.0
    %643 = vmatpush2.msra.mxu0 0.0
    %644 = vmatprep.subr.mxu0 0.0
    %645 = vmatpush2.msra.mxu0 0.0
    %646 = vmatprep.mubr.f32.mxu0 0.0
    %647 = vmatmul.mubr.f32.gmra.mxu0 %v576
    %v648 = vpop.f32.mrf.mxu0
    %v649 = vadd.f32 0.0, %v648
    %v650 = vpop.f32.mrf.mxu0
    %651 = vdwg.mxu0
    %v653 = vsel %vm574, %v548, 0
    %v656 = vsel %vm578, %v569, 0
    %658 = vmatprep.subr.mxu0 0.0
    %659 = vmatpush1.msra.mxu0 0.0
    %660 = vmatprep.subr.mxu0 0.0
    %661 = vmatpush1.msra.mxu0 0.0
    %662 = vmatprep.subr.mxu0 0.0
    %663 = vmatpush1.msra.mxu0 0.0
    %664 = vmatprep.subr.mxu0 0.0
    %665 = vmatpush1.msra.mxu0 0.0
    %666 = vmatprep.subr.mxu0 0.0
    %667 = vmatpush1.msra.mxu0 0.0
    %668 = vmatprep.subr.mxu0 0.0
    %669 = vmatpush1.msra.mxu0 0.0
    %670 = vmatprep.subr.mxu0 0.0
    %671 = vmatpush1.msra.mxu0 0.0
    %672 = vmatprep.subr.mxu0 0.0
    %673 = vmatpush1.msra.mxu0 0.0
    %674 = vmatprep.subr.mxu0 0.0
    %675 = vmatpush1.msra.mxu0 0.0
    %676 = vmatprep.subr.mxu0 0.0
    %677 = vmatpush1.msra.mxu0 0.0
    %678 = vmatprep.subr.mxu0 0.0
    %679 = vmatpush1.msra.mxu0 0.0
    %680 = vmatprep.subr.mxu0 0.0
    %681 = vmatpush1.msra.mxu0 0.0
    %682 = vmatprep.subr.mxu0 0.0
    %683 = vmatpush1.msra.mxu0 0.0
    %684 = vmatprep.subr.mxu0 0.0
    %685 = vmatpush1.msra.mxu0 0.0
    %686 = vmatprep.subr.mxu0 0.0
    %687 = vmatpush1.msra.mxu0 0.0
    %688 = vmatprep.subr.mxu0 0.0
    %689 = vmatpush1.msra.mxu0 %v656
    %690 = vmatprep.subr.mxu0 0.0
    %691 = vmatpush2.msra.mxu0 0.0
    %692 = vmatprep.subr.mxu0 0.0
    %693 = vmatpush2.msra.mxu0 0.0
    %694 = vmatprep.subr.mxu0 0.0
    %695 = vmatpush2.msra.mxu0 0.0
    %696 = vmatprep.subr.mxu0 0.0
    %697 = vmatpush2.msra.mxu0 0.0
    %698 = vmatprep.subr.mxu0 0.0
    %699 = vmatpush2.msra.mxu0 0.0
    %700 = vmatprep.subr.mxu0 0.0
    %701 = vmatpush2.msra.mxu0 0.0
    %702 = vmatprep.subr.mxu0 0.0
    %703 = vmatpush2.msra.mxu0 0.0
    %704 = vmatprep.subr.mxu0 0.0
    %705 = vmatpush2.msra.mxu0 0.0
    %706 = vmatprep.subr.mxu0 0.0
    %707 = vmatpush2.msra.mxu0 0.0
    %708 = vmatprep.subr.mxu0 0.0
    %709 = vmatpush2.msra.mxu0 0.0
    %710 = vmatprep.subr.mxu0 0.0
    %711 = vmatpush2.msra.mxu0 0.0
    %712 = vmatprep.subr.mxu0 0.0
    %713 = vmatpush2.msra.mxu0 0.0
    %714 = vmatprep.subr.mxu0 0.0
    %715 = vmatpush2.msra.mxu0 0.0
    %716 = vmatprep.subr.mxu0 0.0
    %717 = vmatpush2.msra.mxu0 0.0
    %718 = vmatprep.subr.mxu0 0.0
    %719 = vmatpush2.msra.mxu0 0.0
    %720 = vmatprep.subr.mxu0 0.0
    %721 = vmatpush2.msra.mxu0 0.0
    %722 = vmatprep.mubr.f32.mxu0 0.0
    %723 = vmatmul.mubr.f32.gmra.mxu0 %v653
    %v724 = vpop.f32.mrf.mxu0
    %v725 = vadd.f32 %v649, %v724
    %v726 = vpop.f32.mrf.mxu0
    %727 = vdwg.mxu0
    %v728 = vadd.s32 %v564, 8
    %v729 = vadd.s32 %v564, 6
    %v730 = vadd.s32 %v728, 6
    %vm731 = vcmp.eq.s32.totalorder %v566, %v729
    %vm732 = vcmp.eq.s32.totalorder %v566, %v730
    %v733 = vsel %vm731, 1, 0
    %v734 = vsel %vm732, 1, 0
    %v735 = vcvt.s32.f32 %v733
    %v736 = vcvt.s32.f32 %v734
    %737 = vmatprep.subr.mxu0 0.0
    %738 = vmatpush1.msra.mxu0 0.0
    %739 = vmatprep.subr.mxu0 0.0
    %740 = vmatpush1.msra.mxu0 0.0
    %741 = vmatprep.subr.mxu0 0.0
    %742 = vmatpush1.msra.mxu0 0.0
    %743 = vmatprep.subr.mxu0 0.0
    %744 = vmatpush1.msra.mxu0 0.0
    %745 = vmatprep.subr.mxu0 0.0
    %746 = vmatpush1.msra.mxu0 0.0
    %747 = vmatprep.subr.mxu0 0.0
    %748 = vmatpush1.msra.mxu0 0.0
    %749 = vmatprep.subr.mxu0 0.0
    %750 = vmatpush1.msra.mxu0 0.0
    %751 = vmatprep.subr.mxu0 0.0
    %752 = vmatpush1.msra.mxu0 0.0
    %753 = vmatprep.subr.mxu0 0.0
    %754 = vmatpush1.msra.mxu0 0.0
    %755 = vmatprep.subr.mxu0 0.0
    %756 = vmatpush1.msra.mxu0 0.0
    %757 = vmatprep.subr.mxu0 0.0
    %758 = vmatpush1.msra.mxu0 0.0
    %759 = vmatprep.subr.mxu0 0.0
    %760 = vmatpush1.msra.mxu0 0.0
    %761 = vmatprep.subr.mxu0 0.0
    %762 = vmatpush1.msra.mxu0 0.0
    %763 = vmatprep.subr.mxu0 0.0
    %764 = vmatpush1.msra.mxu0 0.0
    %765 = vmatprep.subr.mxu0 0.0
    %766 = vmatpush1.msra.mxu0 %v736
    %767 = vmatprep.subr.mxu0 0.0
    %768 = vmatpush1.msra.mxu0 %v735
    %769 = vmatprep.subr.mxu0 0.0
    %770 = vmatpush2.msra.mxu0 0.0
    %771 = vmatprep.subr.mxu0 0.0
    %772 = vmatpush2.msra.mxu0 0.0
    %773 = vmatprep.subr.mxu0 0.0
    %774 = vmatpush2.msra.mxu0 0.0
    %775 = vmatprep.subr.mxu0 0.0
    %776 = vmatpush2.msra.mxu0 0.0
    %777 = vmatprep.subr.mxu0 0.0
    %778 = vmatpush2.msra.mxu0 0.0
    %779 = vmatprep.subr.mxu0 0.0
    %780 = vmatpush2.msra.mxu0 0.0
    %781 = vmatprep.subr.mxu0 0.0
    %782 = vmatpush2.msra.mxu0 0.0
    %783 = vmatprep.subr.mxu0 0.0
    %784 = vmatpush2.msra.mxu0 0.0
    %785 = vmatprep.subr.mxu0 0.0
    %786 = vmatpush2.msra.mxu0 0.0
    %787 = vmatprep.subr.mxu0 0.0
    %788 = vmatpush2.msra.mxu0 0.0
    %789 = vmatprep.subr.mxu0 0.0
    %790 = vmatpush2.msra.mxu0 0.0
    %791 = vmatprep.subr.mxu0 0.0
    %792 = vmatpush2.msra.mxu0 0.0
    %793 = vmatprep.subr.mxu0 0.0
    %794 = vmatpush2.msra.mxu0 0.0
    %795 = vmatprep.subr.mxu0 0.0
    %796 = vmatpush2.msra.mxu0 0.0
    %797 = vmatprep.subr.mxu0 0.0
    %798 = vmatpush2.msra.mxu0 0.0
    %799 = vmatprep.subr.mxu0 0.0
    %800 = vmatpush2.msra.mxu0 0.0
    %801 = vmatprep.mubr.f32.mxu0 0.0
    %802 = vmatmul.mubr.f32.gmra.mxu0 %v479
    %v803 = vpop.f32.mrf.mxu0
    %v804 = vadd.f32 0.0, %v803
    %v805 = vpop.f32.mrf.mxu0
    %806 = vdwg.mxu0
    %v807 = vadd.f32 %v725, %v804
    %v808 = vadd.s32 %v564, 22
    %v809 = vadd.s32 %v728, 22
    %vm810 = vcmp.eq.s32.totalorder %v566, %v808
    %vm811 = vcmp.eq.s32.totalorder %v566, %v809
    %v812 = vsel %vm810, 1, 0
    %v813 = vsel %vm811, 1, 0
    %v814 = vcvt.s32.f32 %v812
    %v815 = vcvt.s32.f32 %v813
    %v817 = vsel %vm47, %v471, 0
    %819 = vmatprep.subr.mxu0 0.0
    %820 = vmatpush1.msra.mxu0 0.0
    %821 = vmatprep.subr.mxu0 0.0
    %822 = vmatpush1.msra.mxu0 0.0
    %823 = vmatprep.subr.mxu0 0.0
    %824 = vmatpush1.msra.mxu0 0.0
    %825 = vmatprep.subr.mxu0 0.0
    %826 = vmatpush1.msra.mxu0 0.0
    %827 = vmatprep.subr.mxu0 0.0
    %828 = vmatpush1.msra.mxu0 0.0
    %829 = vmatprep.subr.mxu0 0.0
    %830 = vmatpush1.msra.mxu0 0.0
    %831 = vmatprep.subr.mxu0 0.0
    %832 = vmatpush1.msra.mxu0 0.0
    %833 = vmatprep.subr.mxu0 0.0
    %834 = vmatpush1.msra.mxu0 0.0
    %835 = vmatprep.subr.mxu0 0.0
    %836 = vmatpush1.msra.mxu0 0.0
    %837 = vmatprep.subr.mxu0 0.0
    %838 = vmatpush1.msra.mxu0 0.0
    %839 = vmatprep.subr.mxu0 0.0
    %840 = vmatpush1.msra.mxu0 0.0
    %841 = vmatprep.subr.mxu0 0.0
    %842 = vmatpush1.msra.mxu0 0.0
    %843 = vmatprep.subr.mxu0 0.0
    %844 = vmatpush1.msra.mxu0 0.0
    %845 = vmatprep.subr.mxu0 0.0
    %846 = vmatpush1.msra.mxu0 0.0
    %847 = vmatprep.subr.mxu0 0.0
    %848 = vmatpush1.msra.mxu0 %v815
    %849 = vmatprep.subr.mxu0 0.0
    %850 = vmatpush1.msra.mxu0 %v814
    %851 = vmatprep.subr.mxu0 0.0
    %852 = vmatpush2.msra.mxu0 0.0
    %853 = vmatprep.subr.mxu0 0.0
    %854 = vmatpush2.msra.mxu0 0.0
    %855 = vmatprep.subr.mxu0 0.0
    %856 = vmatpush2.msra.mxu0 0.0
    %857 = vmatprep.subr.mxu0 0.0
    %858 = vmatpush2.msra.mxu0 0.0
    %859 = vmatprep.subr.mxu0 0.0
    %860 = vmatpush2.msra.mxu0 0.0
    %861 = vmatprep.subr.mxu0 0.0
    %862 = vmatpush2.msra.mxu0 0.0
    %863 = vmatprep.subr.mxu0 0.0
    %864 = vmatpush2.msra.mxu0 0.0
    %865 = vmatprep.subr.mxu0 0.0
    %866 = vmatpush2.msra.mxu0 0.0
    %867 = vmatprep.subr.mxu0 0.0
    %868 = vmatpush2.msra.mxu0 0.0
    %869 = vmatprep.subr.mxu0 0.0
    %870 = vmatpush2.msra.mxu0 0.0
    %871 = vmatprep.subr.mxu0 0.0
    %872 = vmatpush2.msra.mxu0 0.0
    %873 = vmatprep.subr.mxu0 0.0
    %874 = vmatpush2.msra.mxu0 0.0
    %875 = vmatprep.subr.mxu0 0.0
    %876 = vmatpush2.msra.mxu0 0.0
    %877 = vmatprep.subr.mxu0 0.0
    %878 = vmatpush2.msra.mxu0 0.0
    %879 = vmatprep.subr.mxu0 0.0
    %880 = vmatpush2.msra.mxu0 0.0
    %881 = vmatprep.subr.mxu0 0.0
    %882 = vmatpush2.msra.mxu0 0.0
    %883 = vmatprep.mubr.f32.mxu0 0.0
    %884 = vmatmul.mubr.f32.gmra.mxu0 %v817
    %v885 = vpop.f32.mrf.mxu0
    %v886 = vadd.f32 0.0, %v885
    %v887 = vpop.f32.mrf.mxu0
    %888 = vdwg.mxu0
    %v889 = vadd.f32 %v807, %v886
    %890 = vst [vmem:[#allocation6] sm:$0x3] %v889
    // Predicated region
    $region38: #{tpu_custom_call.1} parent=1 // pred_check
      _
    $region39: #{tpu_custom_call.1} parent=1 // pred_check_branch
      %892 = sbr.rel (0) target = $region41
    $region40: #{tpu_custom_call.1} parent=1 // pred_region
      %s894 = ssub.s32 256, 256
      %895 = vsyncadd [#allocation3], %s894
      %s896 = sshll.u32 [#allocation2], 4
      %s897 = int_to_ptr.vmem [resolvable:$true] %s896
      %902 = dma.vmem_to_hbm [thread:$0]  %s897, 256, %s9, [#allocation3], 128, 128, 8
    $region41: #{tpu_custom_call.1} parent=1 // pred_fallthru
      _
    // Predicated region
    $region42: #{tpu_custom_call.1} parent=1 // pred_check
      _
    $region43: #{tpu_custom_call.1} parent=1 // pred_check_branch
      %904 = sbr.rel (0) target = $region45
    $region44: #{tpu_custom_call.1} parent=1 // pred_region
      %s906 = ssub.s32 32, 32
      %907 = vsyncadd [#allocation5], %s906
      %s909 = sshll.u32 [#allocation4], 4
      %s910 = int_to_ptr.vmem [resolvable:$true] %s909
      %912 = dma.vmem_to_hbm [thread:$0]  %s910, 32, %s10, [#allocation5]
    $region45: #{tpu_custom_call.1} parent=1 // pred_fallthru
      _
    // Predicated region
    $region46: #{tpu_custom_call.1} parent=1 // pred_check
      _
    $region47: #{tpu_custom_call.1} parent=1 // pred_check_branch
      %914 = sbr.rel (0) target = $region49
    $region48: #{tpu_custom_call.1} parent=1 // pred_region
      %s916 = ssub.s32 32, 32
      %917 = vsyncadd [#allocation5], %s916
      %s919 = sshll.u32 [#allocation6], 4
      %s920 = int_to_ptr.vmem [resolvable:$true] %s919
      %922 = dma.vmem_to_hbm [thread:$0]  %s920, 32, %s11, [#allocation5]
    $region49: #{tpu_custom_call.1} parent=1 // pred_fallthru
      _
    // Predicated region
    $region50: #{tpu_custom_call.1} parent=1 // pred_check
      _
    $region51: #{tpu_custom_call.1} parent=1 // pred_check_branch
      %924 = sbr.rel (0) target = $region53
    $region52: #{tpu_custom_call.1} parent=1 // pred_region
      %925 = dma.done [#allocation3], 256
    $region53: #{tpu_custom_call.1} parent=1 // pred_fallthru
      _
    // Predicated region
    $region54: #{tpu_custom_call.1} parent=1 // pred_check
      _
    $region55: #{tpu_custom_call.1} parent=1 // pred_check_branch
      %927 = sbr.rel (0) target = $region57
    $region56: #{tpu_custom_call.1} parent=1 // pred_region
      %928 = dma.done [#allocation5], 32
    $region57: #{tpu_custom_call.1} parent=1 // pred_fallthru
      _
    // Predicated region
    $region58: #{tpu_custom_call.1} parent=1 // pred_check
      _
    $region59: #{tpu_custom_call.1} parent=1 // pred_check_branch
      %930 = sbr.rel (0) target = $region61
    $region60: #{tpu_custom_call.1} parent=1 // pred_region
      %931 = dma.done [#allocation5], 32
    $region61: #{tpu_custom_call.1} parent=1 // pred_fallthru
      _
    %932 = vsyncpa [#allocation3], 1
    %933 = vsyncpa [#allocation5], 1

</llo_original>
